<compile_context>
chip_gen: v7x
topology: tpu7x:2x2x1
jax: 0.10.0
libtpu: 0.0.40
codegen_flags: <defaults>
</compile_context>

<pallas_src>
import math

import jax
import jax.numpy as jnp
from jax.experimental import pallas as pl
from jax.experimental.pallas import tpu as pltpu


def _cdiv(a, b):
    return -(-a // b)


def _round_up(x, m):
    return ((x + m - 1) // m) * m


def _mse_partial_kernel(a_ref, b_ref, out_ref, acc_ref):
    """Accumulates the sum of squared differences for one row partition."""
    j = pl.program_id(1)  # inner (reduction) axis

    @pl.when(j == 0)
    def _():
        acc_ref[...] = jnp.zeros_like(acc_ref)

    diff = a_ref[...].astype(jnp.float32) - b_ref[...].astype(jnp.float32)
    sq = diff * diff
    rb, lanes = sq.shape  # static tile shape
    # Fold the (rb, L) tile onto the (8, L) accumulator: vreg-aligned VPU adds
    # only; no cross-lane reduce and no scalar RMW in the hot path.
    acc_ref[...] += jnp.sum(sq.reshape(rb // 8, 8, lanes), axis=0)

    # Final step for this partition: single full reduce -> SMEM scalar slot.
    @pl.when(j == pl.num_programs(1) - 1)
    def _():
        out_ref[0, 0] = jnp.sum(acc_ref[...])


def syn_loss_pallas(orgin, recon, *, lane_width=512, target_row_block=1024):
    """MSE loss between two same-shaped arrays, computed in a Pallas kernel."""
    assert orgin.shape == recon.shape, "orgin / recon shape mismatch"
    n_true = math.prod(orgin.shape)
    assert n_true > 0, "empty input"

    a = orgin.reshape(-1)
    b = recon.reshape(-1)

    L = lane_width  # multiple of 128 -> full 128-lane vregs for any (B, C, V)
    m_min = _cdiv(n_true, L)

    # Split rows across (up to) two TensorCores when there is enough work.
    # Harmless on single-TC chips (just a size-2 outer loop).
    P = 2 if m_min >= 32 else 1
    rows_per_part = _cdiv(m_min, P)

    # Row tile: multiple of 16 (packing-friendly if inputs are ever bf16),
    # capped so double-buffered tiles stay well under every chip's default
    # scoped-VMEM budget (1024 x 512 x 4 B = 2 MiB per input tile).
    row_block = min(target_row_block, _round_up(rows_per_part, 16))
    num_j = _cdiv(rows_per_part, row_block)
    m_pad = P * num_j * row_block

    pad = m_pad * L - n_true
    if pad:
        # Zero padding contributes exactly 0 to the sum of squared diffs.
        a = jnp.pad(a, (0, pad))
        b = jnp.pad(b, (0, pad))
    a = a.reshape(m_pad, L)
    b = b.reshape(m_pad, L)

    def in_map(p, j):
        return (p * num_j + j, 0)

    partials = pl.pallas_call(
        _mse_partial_kernel,
        out_shape=jax.ShapeDtypeStruct((P, 1), jnp.float32),
        grid_spec=pltpu.PrefetchScalarGridSpec(
            num_scalar_prefetch=0,
            grid=(P, num_j),
            in_specs=[
                pl.BlockSpec((row_block, L), in_map),
                pl.BlockSpec((row_block, L), in_map),
            ],
            out_specs=pl.BlockSpec(
                (1, 1), lambda p, j: (p, 0), memory_space=pltpu.SMEM
            ),
            scratch_shapes=[pltpu.VMEM((8, L), jnp.float32)],
        ),
        compiler_params=pltpu.CompilerParams(
            dimension_semantics=("parallel", "arbitrary"),
        ),
    )(a, b)

    # Combine per-core partial sums and apply the 'mean' reduction.
    return jnp.sum(partials) / jnp.float32(n_true)


if __name__ == "__main__":
    # Small shapes consistent with the module's forward: (B, C, V).
    B, C, V = 2, 4, 128

    key = jax.random.PRNGKey(0)
    k1, k2, k3, k4 = jax.random.split(key, 4)
    orgin = jax.random.normal(k1, (B, C, V), dtype=jnp.float32)
    recon = jax.random.normal(k2, (B, C, V), dtype=jnp.float32)

    loss = jax.block_until_ready(syn_loss_pallas(orgin, recon))
    ref = jnp.mean((orgin - recon) ** 2)
    assert jnp.allclose(loss, ref, rtol=1e-5, atol=1e-6), (loss, ref)

    # Second shape whose element count is not a multiple of the lane slab:
    # exercises the zero-padding / row-tile-rounding path.
    o2 = jax.random.normal(k3, (3, 5, 100), dtype=jnp.float32)
    r2 = jax.random.normal(k4, (3, 5, 100), dtype=jnp.float32)
    loss2 = jax.block_until_ready(syn_loss_pallas(o2, r2))
    ref2 = jnp.mean((o2 - r2) ** 2)
    assert jnp.allclose(loss2, ref2, rtol=1e-5, atol=1e-6), (loss2, ref2)

    print("KERNEL_OK")
</pallas_src>

<mosaic_0001>
module attributes {stable_mosaic.version = 11 : i64} {
  func.func @_mse_partial_kernel(%arg0: i32, %arg1: i32, %arg2: memref<16x512xf32, #tpu.memory_space<vmem>>, %arg3: memref<16x512xf32, #tpu.memory_space<vmem>>, %arg4: memref<1x1xf32, #tpu.memory_space<smem>>, %arg5: memref<8x512xf32, #tpu.memory_space<vmem>>) attributes {dimension_semantics = [#tpu.dimension_semantics<parallel>, #tpu.dimension_semantics<arbitrary>], iteration_bounds = array<i64: 1, 1>, scalar_prefetch = 0 : i64, scratch_operands = 1 : i64, tpu.core_type = #tpu.core_type<tc>, window_params = [{transform_indices = @transform_0, window_bounds = array<i64: 16, 512>}, {transform_indices = @transform_1, window_bounds = array<i64: 16, 512>}, {transform_indices = @transform_2, window_bounds = array<i64: 1, 1>}]} {
    %c0_i32 = arith.constant 0 : i32
    %0 = arith.cmpi eq, %arg1, %c0_i32 : i32
    %1 = arith.extui %0 : i1 to i32
    %c0_i32_0 = arith.constant 0 : i32
    %2 = arith.cmpi ne, %1, %c0_i32_0 : i32
    scf.if %2 {
      %cst_10 = arith.constant 0.000000e+00 : f32
      %15 = vector.broadcast %cst_10 : f32 to vector<8x512xf32>
      %c0_11 = arith.constant 0 : index
      %c0_12 = arith.constant 0 : index
      %16 = vector.load %arg5[%c0_11, %c0_12] : memref<8x512xf32, #tpu.memory_space<vmem>>, vector<8x512xf32>
      tpu.vector_store %arg5[%c0_11, %c0_12], %15 {strides = array<i32>} : memref<8x512xf32, #tpu.memory_space<vmem>>, vector<8x512xf32>,
    } else {
    }
    %c0 = arith.constant 0 : index
    %c0_1 = arith.constant 0 : index
    %3 = vector.load %arg2[%c0, %c0_1] : memref<16x512xf32, #tpu.memory_space<vmem>>, vector<16x512xf32>
    %c0_2 = arith.constant 0 : index
    %c0_3 = arith.constant 0 : index
    %4 = vector.load %arg3[%c0_2, %c0_3] : memref<16x512xf32, #tpu.memory_space<vmem>>, vector<16x512xf32>
    %5 = arith.subf %3, %4 : vector<16x512xf32>
    %6 = arith.mulf %5, %5 : vector<16x512xf32>
    %c0_4 = arith.constant 0 : index
    %c0_5 = arith.constant 0 : index
    %7 = vector.load %arg5[%c0_4, %c0_5] : memref<8x512xf32, #tpu.memory_space<vmem>>, vector<8x512xf32>
    %8 = vector.shape_cast %6 : vector<16x512xf32> to vector<2x8x512xf32>
    %cst = arith.constant dense<0.000000e+00> : vector<8x512xf32>
    %9 = vector.multi_reduction <add>, %8, %cst [0] : vector<2x8x512xf32> to vector<8x512xf32>
    %10 = arith.addf %7, %9 : vector<8x512xf32>
    %c0_6 = arith.constant 0 : index
    %c0_7 = arith.constant 0 : index
    %11 = vector.load %arg5[%c0_6, %c0_7] : memref<8x512xf32, #tpu.memory_space<vmem>>, vector<8x512xf32>
    tpu.vector_store %arg5[%c0_6, %c0_7], %10 {strides = array<i32>} : memref<8x512xf32, #tpu.memory_space<vmem>>, vector<8x512xf32>,
    %c0_i32_8 = arith.constant 0 : i32
    %12 = arith.cmpi eq, %arg1, %c0_i32_8 : i32
    %13 = arith.extui %12 : i1 to i32
    %c0_i32_9 = arith.constant 0 : i32
    %14 = arith.cmpi ne, %13, %c0_i32_9 : i32
    scf.if %14 {
      %c0_10 = arith.constant 0 : index
      %c0_11 = arith.constant 0 : index
      %15 = vector.load %arg5[%c0_10, %c0_11] : memref<8x512xf32, #tpu.memory_space<vmem>>, vector<8x512xf32>
      %16 = vector.shape_cast %15 : vector<8x512xf32> to vector<1x8x512xf32>
      %cst_12 = arith.constant dense<0.000000e+00> : vector<1xf32>
      %17 = vector.multi_reduction <add>, %16, %cst_12 [1, 2] : vector<1x8x512xf32> to vector<1xf32>
      %18 = vector.shape_cast %17 : vector<1xf32> to vector<1x1x1xf32>
      %19 = vector.extract %18[0, 0, 0] : f32 from vector<1x1x1xf32>
      %c0_13 = arith.constant 0 : index
      %c0_14 = arith.constant 0 : index
      %20 = memref.load %arg4[%c0_13, %c0_14] : memref<1x1xf32, #tpu.memory_space<smem>>
      memref.store %19, %arg4[%c0_13, %c0_14] : memref<1x1xf32, #tpu.memory_space<smem>>
    } else {
    }
    return
  }
  func.func @transform_0(%arg0: i32, %arg1: i32) -> (i32, i32) {
    %c1_i32 = arith.constant 1 : i32
    %0 = arith.muli %arg0, %c1_i32 : i32
    %1 = arith.addi %0, %arg1 : i32
    %c0_i32 = arith.constant 0 : i32
    %c0_i32_0 = arith.constant 0 : i32
    return %1, %c0_i32 : i32, i32
  }
  func.func @transform_1(%arg0: i32, %arg1: i32) -> (i32, i32) {
    %c1_i32 = arith.constant 1 : i32
    %0 = arith.muli %arg0, %c1_i32 : i32
    %1 = arith.addi %0, %arg1 : i32
    %c0_i32 = arith.constant 0 : i32
    %c0_i32_0 = arith.constant 0 : i32
    return %1, %c0_i32 : i32, i32
  }
  func.func @transform_2(%arg0: i32, %arg1: i32) -> (i32, i32) {
    %c0_i32 = arith.constant 0 : i32
    %c0_i32_0 = arith.constant 0 : i32
    return %arg0, %c0_i32 : i32, i32
  }
}

</mosaic_0001>

<llo_original>
// kernel: tpu_custom_call.1
$region0: #{tpu_custom_call.1}
  #allocation0 [shape = 'u32[]', space=smem, size = 0x4, offset = 0x4, fixed_abs, tag = 'smem constant byte address 0x4 - core index']
  #allocation1 [shape = 'u32[144,128]{1,0:T(1,128)}', space=vmem, size = 0x12000, scoped, tag = 'internal scratch']
  #allocation2 [shape = 'f32[8,512]{1,0:T(8,128)}', space=vmem, size = 0x4000, scoped, tag = 'scratch operand']
  %s0 = inlined_call_operand.hbm [shape: f32[16,512], index: 0, kind: input, shape index: {}]
  %s1 = inlined_call_operand.hbm [shape: f32[16,512], index: 1, kind: input, shape index: {}]
  %s2 = inlined_call_operand.hbm [shape: f32[1,1], index: 2, kind: output, shape index: {}]
  %s3 = sld [smem:[#allocation0]]
  $region34: #{tpu_custom_call.1} parent=0
    _
  %s5 = ssub.s32 1, %s3
  %s6 = scalar_select 0, %s5, %s3
  $region1: #{tpu_custom_call.1} parent=0
    #allocation3 [shape = 'u8[32768]{0}', space=vmem, size = 0x8000, scoped, tag = 'input window, operand 0, single buffered']
    #allocation4 [shape = 's32[1]{0}', space=sflag, size = 0x4, scoped, tag = 'scoped memory for tpu_custom_call.1']
    #allocation5 [shape = 's32[1]{0}', space=sflag, size = 0x4, scoped, tag = 'scoped memory for tpu_custom_call.1']
    #allocation6 [shape = 'u8[32768]{0}', space=vmem, size = 0x8000, scoped, tag = 'input window, operand 1, single buffered']
    #allocation7 [shape = 's32[1]{0}', space=sflag, size = 0x4, scoped, tag = 'scoped memory for tpu_custom_call.1']
    #allocation8 [shape = 'u8[512]{0}', space=smem, size = 0x200, scoped, tag = 'output window, operand 0, single buffered']
    %7 = vsyncpa [#allocation4], 0
    %8 = vsyncpa [#allocation7], 0
    %9 = vsyncpa [#allocation5], 0
    // Predicated region
    $region2: #{tpu_custom_call.1} parent=1 // pred_check
      _
    $region3: #{tpu_custom_call.1} parent=1 // pred_check_branch
      %11 = sbr.rel (0) target = $region5
    $region4: #{tpu_custom_call.1} parent=1 // pred_region
      %s12 = sadd.s32 0, 0
      %s13 = smul.u32 2, %s12
      %s15 = ssub.s32 1024, 1024
      %16 = vsyncadd [#allocation4], %s15
      %s17 = smul.addr %s13, 4
      %s18 = smul.addr %s17, 128
      %s19 = scalar_lea.hbm %s0, %s18
      %s20 = sshll.u32 [#allocation3], 4
      %s21 = int_to_ptr.vmem [resolvable:$true] %s20
      %26 = dma.hbm_to_vmem [thread:$0]  %s19, 1024, %s21, [#allocation4], 512, 512, 32
    $region5: #{tpu_custom_call.1} parent=1 // pred_fallthru
      _
    // Predicated region
    $region6: #{tpu_custom_call.1} parent=1 // pred_check
      _
    $region7: #{tpu_custom_call.1} parent=1 // pred_check_branch
      %28 = sbr.rel (0) target = $region9
    $region8: #{tpu_custom_call.1} parent=1 // pred_region
      %s29 = sadd.s32 0, 0
      %s30 = smul.u32 2, %s29
      %s32 = ssub.s32 1024, 1024
      %33 = vsyncadd [#allocation7], %s32
      %s34 = smul.addr %s30, 4
      %s35 = smul.addr %s34, 128
      %s36 = scalar_lea.hbm %s1, %s35
      %s37 = sshll.u32 [#allocation6], 4
      %s38 = int_to_ptr.vmem [resolvable:$true] %s37
      %43 = dma.hbm_to_vmem [thread:$0]  %s36, 1024, %s38, [#allocation7], 512, 512, 32
    $region9: #{tpu_custom_call.1} parent=1 // pred_fallthru
      _
    // Predicated region
    $region10: #{tpu_custom_call.1} parent=1 // pred_check
      _
    $region11: #{tpu_custom_call.1} parent=1 // pred_check_branch
      %45 = sbr.rel (0) target = $region13
    $region12: #{tpu_custom_call.1} parent=1 // pred_region
      %46 = dma.done [#allocation4], 1024
    $region13: #{tpu_custom_call.1} parent=1 // pred_fallthru
      _
    // Predicated region
    $region14: #{tpu_custom_call.1} parent=1 // pred_check
      _
    $region15: #{tpu_custom_call.1} parent=1 // pred_check_branch
      %48 = sbr.rel (0) target = $region17
    $region16: #{tpu_custom_call.1} parent=1 // pred_region
      %49 = dma.done [#allocation7], 1024
    $region17: #{tpu_custom_call.1} parent=1 // pred_fallthru
      _
    %s50 = sadd.s32 0, 0
    %s51 = smul.u32 2, %s50
    %s52 = sadd.s32 0, 0
    %s53 = smul.u32 2, %s52
    %p54 = scmp.eq.s32.totalorder 0, 0
    // Predicated region
    $region18: #{tpu_custom_call.1} parent=1 // pred_check
      %p55 = pneg %p54
    $region19: #{tpu_custom_call.1} parent=1 // pred_check_branch
      %57 = sbr.rel (%p55) target = $region21
    $region20: #{tpu_custom_call.1} parent=1 // pred_region
      %58 = vst [vmem:[#allocation2] sm:$0xff] 0.0
      %59 = vst [vmem:[#allocation2 + $0x8] sm:$0xff] 0.0
      %60 = vst [vmem:[#allocation2 + $0x10] sm:$0xff] 0.0
      %61 = vst [vmem:[#allocation2 + $0x18] sm:$0xff] 0.0
    $region21: #{tpu_custom_call.1} parent=1 // pred_fallthru
      _
    %v62 = vld [vmem:[#allocation3] sm:$0xff]
    %v63 = vld [vmem:[#allocation3 + $0x8] sm:$0xff]
    %v64 = vld [vmem:[#allocation3 + $0x10] sm:$0xff]
    %v65 = vld [vmem:[#allocation3 + $0x18] sm:$0xff]
    %v66 = vld [vmem:[#allocation3 + $0x20] sm:$0xff]
    %v67 = vld [vmem:[#allocation3 + $0x28] sm:$0xff]
    %v68 = vld [vmem:[#allocation3 + $0x30] sm:$0xff]
    %v69 = vld [vmem:[#allocation3 + $0x38] sm:$0xff]
    %v70 = vld [vmem:[#allocation6] sm:$0xff]
    %v71 = vld [vmem:[#allocation6 + $0x8] sm:$0xff]
    %v72 = vld [vmem:[#allocation6 + $0x10] sm:$0xff]
    %v73 = vld [vmem:[#allocation6 + $0x18] sm:$0xff]
    %v74 = vld [vmem:[#allocation6 + $0x20] sm:$0xff]
    %v75 = vld [vmem:[#allocation6 + $0x28] sm:$0xff]
    %v76 = vld [vmem:[#allocation6 + $0x30] sm:$0xff]
    %v77 = vld [vmem:[#allocation6 + $0x38] sm:$0xff]
    %v78 = vsub.f32 %v62, %v70
    %v79 = vsub.f32 %v63, %v71
    %v80 = vsub.f32 %v64, %v72
    %v81 = vsub.f32 %v65, %v73
    %v82 = vsub.f32 %v66, %v74
    %v83 = vsub.f32 %v67, %v75
    %v84 = vsub.f32 %v68, %v76
    %v85 = vsub.f32 %v69, %v77
    %v86 = vmul.f32 %v78, %v78
    %v87 = vmul.f32 %v79, %v79
    %v88 = vmul.f32 %v80, %v80
    %v89 = vmul.f32 %v81, %v81
    %v90 = vmul.f32 %v82, %v82
    %v91 = vmul.f32 %v83, %v83
    %v92 = vmul.f32 %v84, %v84
    %v93 = vmul.f32 %v85, %v85
    %v94 = vld [vmem:[#allocation2] sm:$0xff]
    %v95 = vld [vmem:[#allocation2 + $0x8] sm:$0xff]
    %v96 = vld [vmem:[#allocation2 + $0x10] sm:$0xff]
    %v97 = vld [vmem:[#allocation2 + $0x18] sm:$0xff]
    %v98 = vadd.f32 %v86, %v90
    %v99 = vadd.f32 %v87, %v91
    %v100 = vadd.f32 %v88, %v92
    %v101 = vadd.f32 %v89, %v93
    %v102 = vadd.f32 %v94, %v98
    %v103 = vadd.f32 %v95, %v99
    %v104 = vadd.f32 %v96, %v100
    %v105 = vadd.f32 %v97, %v101
    %106 = vst [vmem:[#allocation2] sm:$0xff] %v102
    %107 = vst [vmem:[#allocation2 + $0x8] sm:$0xff] %v103
    %108 = vst [vmem:[#allocation2 + $0x10] sm:$0xff] %v104
    %109 = vst [vmem:[#allocation2 + $0x18] sm:$0xff] %v105
    // Predicated region
    $region22: #{tpu_custom_call.1} parent=1 // pred_check
      %p110 = pneg %p54
    $region23: #{tpu_custom_call.1} parent=1 // pred_check_branch
      %112 = sbr.rel (%p110) target = $region25
    $region24: #{tpu_custom_call.1} parent=1 // pred_region
      %v113 = vld [vmem:[#allocation2] sm:$0xff]
      %v114 = vld [vmem:[#allocation2 + $0x8] sm:$0xff]
      %v115 = vld [vmem:[#allocation2 + $0x10] sm:$0xff]
      %v116 = vld [vmem:[#allocation2 + $0x18] sm:$0xff]
      %v117 = vadd.f32 %v113, %v114
      %v118 = vadd.f32 %v117, %v115
      %v119 = vadd.f32 %v118, %v116
      %120 = vadd.xlane.f32.xlu0 %v119
      %v121 = vpop.xlane.xlu0 %120
      %v122 = vrot.slane %v121, 4
      %v123 = vadd.f32 %v121, %v122
      %v124 = vrot.slane %v123, 2
      %v125 = vadd.f32 %v123, %v124
      %v126 = vrot.slane %v125, 1
      %v127 = vadd.f32 %v125, %v126
      %s128 = vtos %v127
      %s129 = scalar_lea.smem [#allocation8], 0
      %130 = sst [smem:[%s129]] %s128
    $region25: #{tpu_custom_call.1} parent=1 // pred_fallthru
      _
    // Predicated region
    $region26: #{tpu_custom_call.1} parent=1 // pred_check
      _
    $region27: #{tpu_custom_call.1} parent=1 // pred_check_branch
      %132 = sbr.rel (0) target = $region29
    $region28: #{tpu_custom_call.1} parent=1 // pred_region
      %s134 = ssub.s32 16, 16
      %135 = vsyncadd [#allocation5], %s134
      %138 = dma.smem_to_hbm [#allocation8], 16, %s2, [#allocation5]
    $region29: #{tpu_custom_call.1} parent=1 // pred_fallthru
      _
    // Predicated region
    $region30: #{tpu_custom_call.1} parent=1 // pred_check
      _
    $region31: #{tpu_custom_call.1} parent=1 // pred_check_branch
      %140 = sbr.rel (0) target = $region33
    $region32: #{tpu_custom_call.1} parent=1 // pred_region
      %141 = dma.done [#allocation5], 16
    $region33: #{tpu_custom_call.1} parent=1 // pred_fallthru
      _
    %142 = sfence
    %143 = vsyncpa [#allocation4], 1
    %144 = vsyncpa [#allocation7], 1
    %145 = vsyncpa [#allocation5], 1

</llo_original>
